<compile_context>
chip_gen: v6e
topology: v6e:2x2x1
jax: 0.10.0
libtpu: 0.0.40
codegen_flags: <defaults>
</compile_context>

<pallas_src>
import math

import numpy as np
import jax
import jax.numpy as jnp
from jax.experimental import pallas as pl
from jax.experimental.pallas import tpu as pltpu


_VMEM_BUDGET = 40 * 1024 * 1024   # decision budget for the VMEM-resident-Y path
_VMEM_LIMIT = 48 * 1024 * 1024    # explicit scoped-VMEM limit (fits v5e/v6e/v7x)


def _round_up(x, m):
    return ((x + m - 1) // m) * m


def _propagate_vmem_bytes(tm, tk, d_pad):
    """Conservative (everything double-buffered) VMEM estimate for the propagate kernels."""
    a_tile = 2 * tm * tk * 2          # bf16 A row x source tile
    y_tile = 2 * tk * d_pad * 2       # bf16 Y tile
    w2t = 2 * d_pad * d_pad * 2       # bf16 W2ᵀ               (propagate-1 only)
    bias = 2 * 1 * d_pad * 4
    h1_out = 2 * tm * d_pad * 4       # f32 h1 output
    y2_out = 2 * tm * d_pad * 2       # bf16 y2 output          (propagate-1 only)
    x_res = 2 * tm * d_pad * 2        # bf16 X residual          (propagate-2 only)
    h1_res = 2 * tm * d_pad * 4       # f32 h1 residual          (propagate-2 only)
    out = 2 * tm * d_pad * 4          # f32 final output         (propagate-2 only)
    prop1 = a_tile + y_tile + w2t + bias + h1_out + y2_out
    prop2 = a_tile + y_tile + bias + x_res + h1_res + out
    return max(prop1, prop2)


# ---------------------------------------------------------------------------
# Kernel 1: feature transform  Y1 = X @ W1ᵀ  (W1ᵀ pre-transposed to [in, out]).
# Row-tiled; bf16 operands, f32 MXU accumulation, bf16 output (feeds propagation).
# ---------------------------------------------------------------------------
def _xw_kernel(x_ref, wt_ref, y_ref):
    y_ref[...] = jnp.dot(
        x_ref[...], wt_ref[...], preferred_element_type=jnp.float32
    ).astype(y_ref.dtype)


def _xw(x_bf16, wt_bf16, *, tm):
    n_pad, d_pad = x_bf16.shape
    grid_spec = pltpu.PrefetchScalarGridSpec(
        num_scalar_prefetch=0,
        grid=(n_pad // tm,),
        in_specs=[
            pl.BlockSpec((tm, d_pad), lambda i: (i, 0)),     # X row tile
            pl.BlockSpec((d_pad, d_pad), lambda i: (0, 0)),  # W1ᵀ (constant -> resident)
        ],
        out_specs=pl.BlockSpec((tm, d_pad), lambda i: (i, 0)),
    )
    return pl.pallas_call(
        _xw_kernel,
        out_shape=jax.ShapeDtypeStruct((n_pad, d_pad), jnp.bfloat16),
        grid_spec=grid_spec,
        compiler_params=pltpu.CompilerParams(
            dimension_semantics=("parallel",),
            vmem_limit_bytes=_VMEM_LIMIT),
    )(x_bf16, wt_bf16)


# ---------------------------------------------------------------------------
# Kernel 2: propagation of layer 1, fused with the layer-2 feature transform.
#   h1 = Â @ Y1 + b1                (f32 output, accumulated directly in o-block)
#   y2 = bf16( bf16(h1) @ W2ᵀ )     (computed in the finalize branch on resident data)
# Reduction (source) axis is last; accumulation goes straight into the resident
# f32 h1 output block (constant index over k), so no scratch accumulator is needed.
# ---------------------------------------------------------------------------
def _prop1_kernel(a_ref, y_ref, b_ref, w2t_ref, h1_ref, y2_ref):
    k = pl.program_id(1)

    @pl.when(k == 0)
    def _():
        h1_ref[...] = jnp.zeros_like(h1_ref)

    h1_ref[...] += jnp.dot(
        a_ref[...], y_ref[...], preferred_element_type=jnp.float32
    )

    @pl.when(k == pl.num_programs(1) - 1)
    def _():
        h1 = h1_ref[...] + b_ref[...]
        h1_ref[...] = h1
        y2_ref[...] = jnp.dot(
            h1.astype(jnp.bfloat16), w2t_ref[...],
            preferred_element_type=jnp.float32,
        ).astype(y2_ref.dtype)


def _propagate1(a_bf16, y1_bf16, b1_pad, w2t_bf16, *, tm, tk):
    n_pad = a_bf16.shape[0]
    d_pad = y1_bf16.shape[1]
    grid_spec = pltpu.PrefetchScalarGridSpec(
        num_scalar_prefetch=0,
        grid=(n_pad // tm, n_pad // tk),
        in_specs=[
            pl.BlockSpec((tm, tk), lambda i, k: (i, k)),       # Â row x source tile
            pl.BlockSpec((tk, d_pad), lambda i, k: (k, 0)),    # Y1 source tile
            pl.BlockSpec((1, d_pad), lambda i, k: (0, 0)),     # b1
            pl.BlockSpec((d_pad, d_pad), lambda i, k: (0, 0)),  # W2ᵀ (resident)
        ],
        out_specs=[
            pl.BlockSpec((tm, d_pad), lambda i, k: (i, 0)),    # h1 (f32)
            pl.BlockSpec((tm, d_pad), lambda i, k: (i, 0)),    # y2 (bf16)
        ],
    )
    return pl.pallas_call(
        _prop1_kernel,
        out_shape=(jax.ShapeDtypeStruct((n_pad, d_pad), jnp.float32),
                   jax.ShapeDtypeStruct((n_pad, d_pad), jnp.bfloat16)),
        grid_spec=grid_spec,
        compiler_params=pltpu.CompilerParams(
            dimension_semantics=("parallel", "arbitrary"),
            vmem_limit_bytes=_VMEM_LIMIT),
    )(a_bf16, y1_bf16, b1_pad, w2t_bf16)


# ---------------------------------------------------------------------------
# Kernel 3: propagation of layer 2 fused with the LightGCN mean.
#   out = (X + h1 + Â @ Y2 + b2) / 3
# Accumulates Â @ Y2 directly in the resident f32 output block; residuals (X bf16,
# h1 f32) are indexed by the row tile only, so they stay resident across the k loop.
# ---------------------------------------------------------------------------
def _prop2_kernel(a_ref, y_ref, b_ref, x_ref, h1_ref, o_ref):
    k = pl.program_id(1)

    @pl.when(k == 0)
    def _():
        o_ref[...] = jnp.zeros_like(o_ref)

    o_ref[...] += jnp.dot(
        a_ref[...], y_ref[...], preferred_element_type=jnp.float32
    )

    @pl.when(k == pl.num_programs(1) - 1)
    def _():
        o_ref[...] = (x_ref[...].astype(jnp.float32) + h1_ref[...]
                      + o_ref[...] + b_ref[...]) * (1.0 / 3.0)


def _propagate2(a_bf16, y2_bf16, b2_pad, x_bf16, h1_f32, *, tm, tk):
    n_pad = a_bf16.shape[0]
    d_pad = y2_bf16.shape[1]
    grid_spec = pltpu.PrefetchScalarGridSpec(
        num_scalar_prefetch=0,
        grid=(n_pad // tm, n_pad // tk),
        in_specs=[
            pl.BlockSpec((tm, tk), lambda i, k: (i, k)),       # Â row x source tile
            pl.BlockSpec((tk, d_pad), lambda i, k: (k, 0)),    # Y2 source tile
            pl.BlockSpec((1, d_pad), lambda i, k: (0, 0)),     # b2
            pl.BlockSpec((tm, d_pad), lambda i, k: (i, 0)),    # X residual (bf16)
            pl.BlockSpec((tm, d_pad), lambda i, k: (i, 0)),    # h1 residual (f32)
        ],
        out_specs=pl.BlockSpec((tm, d_pad), lambda i, k: (i, 0)),
    )
    return pl.pallas_call(
        _prop2_kernel,
        out_shape=jax.ShapeDtypeStruct((n_pad, d_pad), jnp.float32),
        grid_spec=grid_spec,
        compiler_params=pltpu.CompilerParams(
            dimension_semantics=("parallel", "arbitrary"),
            vmem_limit_bytes=_VMEM_LIMIT),
    )(a_bf16, y2_bf16, b2_pad, x_bf16, h1_f32)


# ---------------------------------------------------------------------------
# Full forward: pad to lane-dense shapes, pre-transpose weights, cast matmul
# operands to bf16 (built directly in bf16 — no f32 padded-A intermediate),
# then run the two fused GCN layers.
# NOTE: Â is static per graph; callers doing many forwards should hoist the
# padded bf16 A construction out of this function and cache it.
# ---------------------------------------------------------------------------
def graphnn_forward(a_norm, all_emb, w1, b1, w2, b2, *, tm=512, tk=512):
    N, D = all_emb.shape
    d_pad = _round_up(D, 128)
    n_min = _round_up(N, 128)

    # Clamp tiles to the problem size (tiny graphs -> single-step grid, no
    # multi-tile padding waste) and pad N to lcm(tm, tk) so the grid is exact.
    tm = max(8, min(tm, n_min))
    tk = max(128, min(tk, n_min))
    n_pad = _round_up(N, math.lcm(tm, tk))

    # If the whole Y stream fits comfortably in VMEM, collapse the reduction axis:
    # tk = n_pad means the Y block (and W2ᵀ) have constant index maps and are DMA'd
    # once, eliminating the Y re-stream on top of the dominant A stream.
    if _propagate_vmem_bytes(tm, n_pad, d_pad) <= _VMEM_BUDGET:
        tk = n_pad

    # Padding + pre-transpose + bf16 cast happen once, outside the kernels.
    a_bf = jnp.zeros((n_pad, n_pad), jnp.bfloat16).at[:N, :N].set(
        a_norm.astype(jnp.bfloat16))
    x_bf = jnp.zeros((n_pad, d_pad), jnp.bfloat16).at[:N, :D].set(
        all_emb.astype(jnp.bfloat16))
    w1t_bf = jnp.zeros((d_pad, d_pad), jnp.bfloat16).at[:D, :D].set(
        w1.T.astype(jnp.bfloat16))
    w2t_bf = jnp.zeros((d_pad, d_pad), jnp.bfloat16).at[:D, :D].set(
        w2.T.astype(jnp.bfloat16))
    b1p = jnp.zeros((1, d_pad), jnp.float32).at[0, :D].set(b1.reshape(-1))
    b2p = jnp.zeros((1, d_pad), jnp.float32).at[0, :D].set(b2.reshape(-1))

    # --- GCN layer 1:  y1 = X W1ᵀ ;  h1 = Â y1 + b1 ;  (fused) y2 = bf16(h1) W2ᵀ ---
    y1 = _xw(x_bf, w1t_bf, tm=tm)                                  # bf16 [n_pad, d_pad]
    h1, y2 = _propagate1(a_bf, y1, b1p, w2t_bf, tm=tm, tk=tk)      # f32, bf16

    # TODO(synk): nn.Dropout(0.2) is a training-time stochastic op; identity at eval.
    # TODO(synk): self.batch_norm (LayerNorm) is constructed but never used in forward.

    # --- GCN layer 2 + fused LightGCN mean:  out = (X + h1 + Â y2 + b2) / 3 ---
    out = _propagate2(a_bf, y2, b2p, x_bf, h1, tm=tm, tk=tk)       # f32

    return out[:N, :D]


# ---------------------------------------------------------------------------
# Glue (plain JAX): dense PyG-GCNConv normalized adjacency from edge_index.
#   deg[i] = (# incoming edges to i) + 1 (self loop)
#   Â[i, j] = deg^{-1/2}[i] * deg^{-1/2}[j]  for every edge j -> i and i == j.
# ---------------------------------------------------------------------------
def normalized_adjacency(edge_index, n):
    row, col = edge_index[0], edge_index[1]        # edges row -> col (source, target)
    self_idx = jnp.arange(n)
    src = jnp.concatenate([row, self_idx])
    dst = jnp.concatenate([col, self_idx])
    deg = jnp.zeros((n,), jnp.float32).at[dst].add(1.0)
    dinv = jnp.where(deg > 0, 1.0 / jnp.sqrt(deg), 0.0)
    vals = dinv[src] * dinv[dst]
    a = jnp.zeros((n, n), jnp.float32).at[dst, src].add(vals)
    return a


def xavier_uniform(key, shape):
    fan_out, fan_in = shape[0], shape[1]
    bound = float(np.sqrt(6.0 / (fan_in + fan_out)))
    return jax.random.uniform(key, shape, jnp.float32, -bound, bound)


if __name__ == "__main__":
    u_size, i_size, d_size = 8, 8, 32
    N = u_size + i_size

    key = jax.random.PRNGKey(0)
    k_u, k_i, k_w1, k_w2 = jax.random.split(key, 4)

    # Parameters (deterministic xavier-uniform init, matching module shapes).
    u_emb = xavier_uniform(k_u, (u_size, d_size))          # nn.Embedding(u_size, d)
    i_emb = xavier_uniform(k_i, (i_size, d_size))          # nn.Embedding(i_size, d)
    w1 = xavier_uniform(k_w1, (d_size, d_size))            # gnn1.lin.weight [out, in]
    w2 = xavier_uniform(k_w2, (d_size, d_size))            # gnn2.lin.weight [out, in]
    b1 = jnp.zeros((d_size,), jnp.float32)                 # gnn1.bias
    b2 = jnp.zeros((d_size,), jnp.float32)                 # gnn2.bias

    all_emb = jnp.concatenate([u_emb, i_emb], axis=0)      # [N, D]

    # Deterministic bipartite interaction graph (user u <-> item v), both directions,
    # mimicking graph.coalesce().indices() of a symmetric sparse adjacency.
    pairs = [(u, u_size + ((u * 3 + k) % i_size)) for u in range(1, u_size)
             for k in range(2)]
    src = np.array([p[0] for p in pairs] + [p[1] for p in pairs], np.int32)
    dst = np.array([p[1] for p in pairs] + [p[0] for p in pairs], np.int32)
    edge_index = jnp.stack([jnp.asarray(src), jnp.asarray(dst)], axis=0)   # [2, E]

    a_norm = normalized_adjacency(edge_index, N)           # [N, N] dense Â

    out = graphnn_forward(a_norm, all_emb, w1, b1, w2, b2)
    out = jax.block_until_ready(out)
    out_np = np.asarray(out)

    # Reference check (numpy f32, with the same bf16 operand quantization the kernels use).
    def q(x):
        return np.asarray(jnp.asarray(x, jnp.float32)
                          .astype(jnp.bfloat16).astype(jnp.float32))

    a_q, x_q, w1_q, w2_q = q(a_norm), q(all_emb), q(w1), q(w2)
    b1_np = np.asarray(b1).reshape(1, -1)
    b2_np = np.asarray(b2).reshape(1, -1)

    y1_ref = q(x_q @ w1_q.T)                 # kernel-1 output is bf16
    h1_ref = a_q @ y1_ref + b1_np            # f32 propagation
    y2_ref = q(q(h1_ref) @ w2_q.T)           # fused second transform (bf16 in / out)
    h2_ref = a_q @ y2_ref + b2_np
    ref = (x_q + h1_ref + h2_ref) / 3.0      # X residual enters the mean as bf16

    np.testing.assert_allclose(out_np, ref, rtol=2e-2, atol=1e-3)

    print("KERNEL_OK")
</pallas_src>

<mosaic_0001>
module attributes {stable_mosaic.version = 11 : i64} {
  func.func @_xw_kernel(%arg0: i32, %arg1: memref<128x128xbf16, #tpu.memory_space<vmem>>, %arg2: memref<128x128xbf16, #tpu.memory_space<vmem>>, %arg3: memref<128x128xbf16, #tpu.memory_space<vmem>>) attributes {dimension_semantics = [#tpu.dimension_semantics<parallel>], iteration_bounds = array<i64: 1>, scalar_prefetch = 0 : i64, scratch_operands = 0 : i64, tpu.core_type = #tpu.core_type<tc>, window_params = [{transform_indices = @transform_0, window_bounds = array<i64: 128, 128>}, {pipeline_mode = #tpu.pipeline_mode<synchronous>, transform_indices = @transform_1, window_bounds = array<i64: 128, 128>}, {transform_indices = @transform_2, window_bounds = array<i64: 128, 128>}]} {
    %c0 = arith.constant 0 : index
    %c0_0 = arith.constant 0 : index
    %0 = vector.load %arg1[%c0, %c0_0] : memref<128x128xbf16, #tpu.memory_space<vmem>>, vector<128x128xbf16>
    %c0_1 = arith.constant 0 : index
    %c0_2 = arith.constant 0 : index
    %1 = vector.load %arg2[%c0_1, %c0_2] : memref<128x128xbf16, #tpu.memory_space<vmem>>, vector<128x128xbf16>
    %cst = arith.constant dense<0.000000e+00> : vector<128x128xf32>
    %2 = tpu.matmul %0, %1, %cst {dimension_numbers = #tpu.dot_dimension_numbers<[1], [0], [0], [1], [0, 0, 1, 1], [], []>} : vector<128x128xbf16>, vector<128x128xbf16>, vector<128x128xf32> -> vector<128x128xf32>
    %3 = arith.truncf %2 : vector<128x128xf32> to vector<128x128xbf16>
    %c0_3 = arith.constant 0 : index
    %c0_4 = arith.constant 0 : index
    %4 = vector.load %arg3[%c0_3, %c0_4] : memref<128x128xbf16, #tpu.memory_space<vmem>>, vector<128x128xbf16>
    tpu.vector_store %arg3[%c0_3, %c0_4], %3 {strides = array<i32>} : memref<128x128xbf16, #tpu.memory_space<vmem>>, vector<128x128xbf16>,
    return
  }
  func.func @transform_0(%arg0: i32) -> (i32, i32) {
    %c0_i32 = arith.constant 0 : i32
    %c0_i32_0 = arith.constant 0 : i32
    return %arg0, %c0_i32 : i32, i32
  }
  func.func @transform_1(%arg0: i32) -> (i32, i32) {
    %c0_i32 = arith.constant 0 : i32
    %c0_i32_0 = arith.constant 0 : i32
    %c0_i32_1 = arith.constant 0 : i32
    return %c0_i32, %c0_i32_0 : i32, i32
  }
  func.func @transform_2(%arg0: i32) -> (i32, i32) {
    %c0_i32 = arith.constant 0 : i32
    %c0_i32_0 = arith.constant 0 : i32
    return %arg0, %c0_i32 : i32, i32
  }
}

</mosaic_0001>

<llo_original>
// kernel: tpu_custom_call.1
$region0: #{tpu_custom_call.1}
  #allocation0 [shape = 'u32[]', space=smem, size = 0x4, offset = 0x4, fixed_abs, tag = 'smem constant byte address 0x4 - core index']
  #allocation1 [shape = 'u32[144,128]{1,0:T(1,128)}', space=vmem, size = 0x12000, scoped, tag = 'internal scratch']
  %s0 = inlined_call_operand.hbm [shape: bf16[128,128], index: 0, kind: input, shape index: {}]
  %s1 = inlined_call_operand.hbm [shape: bf16[128,128], index: 1, kind: input, shape index: {}]
  %s2 = inlined_call_operand.hbm [shape: bf16[128,128], index: 2, kind: output, shape index: {}]
  %s3 = sld [smem:[#allocation0]]
  $region26: #{tpu_custom_call.1} parent=0
    _
  %s5 = ssub.s32 1, %s3
  %s6 = scalar_select 0, %s5, %s3
  $region1: #{tpu_custom_call.1} parent=0
    #allocation2 [shape = 'u8[32768]{0}', space=vmem, size = 0x8000, scoped, tag = 'input window, operand 0, single buffered']
    #allocation3 [shape = 's32[1]{0}', space=sflag, size = 0x4, scoped, tag = 'scoped memory for tpu_custom_call.1']
    #allocation4 [shape = 's32[1]{0}', space=sflag, size = 0x4, scoped, tag = 'scoped memory for tpu_custom_call.1']
    #allocation5 [shape = 'u8[32768]{0}', space=vmem, size = 0x8000, scoped, tag = 'input window, operand 1, single buffered']
    #allocation6 [shape = 's32[1]{0}', space=sflag, size = 0x4, scoped, tag = 'scoped memory for tpu_custom_call.1']
    #allocation7 [shape = 'u8[32768]{0}', space=vmem, size = 0x8000, scoped, tag = 'output window, operand 0, single buffered']
    %7 = vsyncpa [#allocation3], 0
    %8 = vsyncpa [#allocation6], 0
    %9 = vsyncpa [#allocation4], 0
    // Predicated region
    $region2: #{tpu_custom_call.1} parent=1 // pred_check
      _
    $region3: #{tpu_custom_call.1} parent=1 // pred_check_branch
      %11 = sbr.rel (0) target = $region5
    $region4: #{tpu_custom_call.1} parent=1 // pred_region
      %s13 = ssub.s32 1024, 1024
      %14 = vsyncadd [#allocation3], %s13
      %s15 = sshll.u32 [#allocation2], 4
      %s16 = int_to_ptr.vmem [resolvable:$true] %s15
      %21 = dma.hbm_to_vmem [thread:$0]  %s0, 1024, %s16, [#allocation3], 64, 64, 4
    $region5: #{tpu_custom_call.1} parent=1 // pred_fallthru
      _
    // Predicated region
    $region6: #{tpu_custom_call.1} parent=1 // pred_check
      _
    $region7: #{tpu_custom_call.1} parent=1 // pred_check_branch
      %23 = sbr.rel (0) target = $region9
    $region8: #{tpu_custom_call.1} parent=1 // pred_region
      %s25 = ssub.s32 1024, 1024
      %26 = vsyncadd [#allocation6], %s25
      %s27 = sshll.u32 [#allocation5], 4
      %s28 = int_to_ptr.vmem [resolvable:$true] %s27
      %33 = dma.hbm_to_vmem [thread:$0]  %s1, 1024, %s28, [#allocation6], 64, 64, 4
    $region9: #{tpu_custom_call.1} parent=1 // pred_fallthru
      _
    // Predicated region
    $region10: #{tpu_custom_call.1} parent=1 // pred_check
      _
    $region11: #{tpu_custom_call.1} parent=1 // pred_check_branch
      %35 = sbr.rel (0) target = $region13
    $region12: #{tpu_custom_call.1} parent=1 // pred_region
      %36 = dma.done [#allocation3], 1024
    $region13: #{tpu_custom_call.1} parent=1 // pred_fallthru
      _
    // Predicated region
    $region14: #{tpu_custom_call.1} parent=1 // pred_check
      _
    $region15: #{tpu_custom_call.1} parent=1 // pred_check_branch
      %38 = sbr.rel (0) target = $region17
    $region16: #{tpu_custom_call.1} parent=1 // pred_region
      %39 = dma.done [#allocation6], 1024
    $region17: #{tpu_custom_call.1} parent=1 // pred_fallthru
      _
    %v41 = vld [vmem:[#allocation2] sm:$0xf]
    %v42 = vld [vmem:[#allocation2 + $0x4] sm:$0xf]
    %v43 = vld [vmem:[#allocation2 + $0x8] sm:$0xf]
    %v44 = vld [vmem:[#allocation2 + $0xc] sm:$0xf]
    %v45 = vld [vmem:[#allocation2 + $0x10] sm:$0xf]
    %v46 = vld [vmem:[#allocation2 + $0x14] sm:$0xf]
    %v47 = vld [vmem:[#allocation2 + $0x18] sm:$0xf]
    %v48 = vld [vmem:[#allocation2 + $0x1c] sm:$0xf]
    %v49 = vld [vmem:[#allocation2 + $0x20] sm:$0xf]
    %v50 = vld [vmem:[#allocation2 + $0x24] sm:$0xf]
    %v51 = vld [vmem:[#allocation2 + $0x28] sm:$0xf]
    %v52 = vld [vmem:[#allocation2 + $0x2c] sm:$0xf]
    %v53 = vld [vmem:[#allocation2 + $0x30] sm:$0xf]
    %v54 = vld [vmem:[#allocation2 + $0x34] sm:$0xf]
    %v55 = vld [vmem:[#allocation2 + $0x38] sm:$0xf]
    %v56 = vld [vmem:[#allocation2 + $0x3c] sm:$0xf]
    %v57 = vld [vmem:[#allocation5] sm:$0xf]
    %v58 = vld [vmem:[#allocation5 + $0x4] sm:$0xf]
    %v59 = vld [vmem:[#allocation5 + $0x8] sm:$0xf]
    %v60 = vld [vmem:[#allocation5 + $0xc] sm:$0xf]
    %v61 = vld [vmem:[#allocation5 + $0x10] sm:$0xf]
    %v62 = vld [vmem:[#allocation5 + $0x14] sm:$0xf]
    %v63 = vld [vmem:[#allocation5 + $0x18] sm:$0xf]
    %v64 = vld [vmem:[#allocation5 + $0x1c] sm:$0xf]
    %v65 = vld [vmem:[#allocation5 + $0x20] sm:$0xf]
    %v66 = vld [vmem:[#allocation5 + $0x24] sm:$0xf]
    %v67 = vld [vmem:[#allocation5 + $0x28] sm:$0xf]
    %v68 = vld [vmem:[#allocation5 + $0x2c] sm:$0xf]
    %v69 = vld [vmem:[#allocation5 + $0x30] sm:$0xf]
    %v70 = vld [vmem:[#allocation5 + $0x34] sm:$0xf]
    %v71 = vld [vmem:[#allocation5 + $0x38] sm:$0xf]
    %v72 = vld [vmem:[#allocation5 + $0x3c] sm:$0xf]
    %v89 = vunpack.c.l.b16 %v41
    %v90 = vunpack.c.l.b16 %v42
    %v91 = vunpack.c.l.b16 %v43
    %v92 = vunpack.c.l.b16 %v44
    %v93 = vunpack.c.l.b16 %v45
    %v94 = vunpack.c.l.b16 %v46
    %v95 = vunpack.c.l.b16 %v47
    %v96 = vunpack.c.l.b16 %v48
    %v97 = vunpack.c.l.b16 %v49
    %v98 = vunpack.c.l.b16 %v50
    %v99 = vunpack.c.l.b16 %v51
    %v100 = vunpack.c.l.b16 %v52
    %v101 = vunpack.c.l.b16 %v53
    %v102 = vunpack.c.l.b16 %v54
    %v103 = vunpack.c.l.b16 %v55
    %v104 = vunpack.c.l.b16 %v56
    %v105 = vpack.c.b16 %v90, %v89
    %v106 = vpack.c.b16 %v92, %v91
    %v107 = vpack.c.b16 %v94, %v93
    %v108 = vpack.c.b16 %v96, %v95
    %v109 = vpack.c.b16 %v98, %v97
    %v110 = vpack.c.b16 %v100, %v99
    %v111 = vpack.c.b16 %v102, %v101
    %v112 = vpack.c.b16 %v104, %v103
    %v137 = vunpack.c.l.b16 %v57
    %v138 = vunpack.c.l.b16 %v58
    %v139 = vunpack.c.l.b16 %v59
    %v140 = vunpack.c.l.b16 %v60
    %v141 = vunpack.c.l.b16 %v61
    %v142 = vunpack.c.l.b16 %v62
    %v143 = vunpack.c.l.b16 %v63
    %v144 = vunpack.c.l.b16 %v64
    %v145 = vunpack.c.l.b16 %v65
    %v146 = vunpack.c.l.b16 %v66
    %v147 = vunpack.c.l.b16 %v67
    %v148 = vunpack.c.l.b16 %v68
    %v149 = vunpack.c.l.b16 %v69
    %v150 = vunpack.c.l.b16 %v70
    %v151 = vunpack.c.l.b16 %v71
    %v152 = vunpack.c.l.b16 %v72
    %v153 = vpack.c.b16 %v138, %v137
    %v154 = vpack.c.b16 %v140, %v139
    %v155 = vpack.c.b16 %v142, %v141
    %v156 = vpack.c.b16 %v144, %v143
    %v157 = vpack.c.b16 %v146, %v145
    %v158 = vpack.c.b16 %v148, %v147
    %v159 = vpack.c.b16 %v150, %v149
    %v160 = vpack.c.b16 %v152, %v151
    %169 = vmatprep.subr.bf16.mxu0 0
    %170 = vmatpush1.bf16.msra.mxu0 %v160
    %171 = vmatprep.subr.bf16.mxu0 0
    %172 = vmatpush1.bf16.msra.mxu0 %v159
    %173 = vmatprep.subr.bf16.mxu0 0
    %174 = vmatpush1.bf16.msra.mxu0 %v158
    %175 = vmatprep.subr.bf16.mxu0 0
    %176 = vmatpush1.bf16.msra.mxu0 %v157
    %177 = vmatprep.subr.bf16.mxu0 0
    %178 = vmatpush1.bf16.msra.mxu0 %v156
    %179 = vmatprep.subr.bf16.mxu0 0
    %180 = vmatpush1.bf16.msra.mxu0 %v155
    %181 = vmatprep.subr.bf16.mxu0 0
    %182 = vmatpush1.bf16.msra.mxu0 %v154
    %183 = vmatprep.subr.bf16.mxu0 0
    %184 = vmatpush1.bf16.msra.mxu0 %v153
    %185 = vmatprep.subr.bf16.mxu0 0
    %186 = vmatpush2.bf16.msra.mxu0 0
    %187 = vmatprep.subr.bf16.mxu0 0
    %188 = vmatpush2.bf16.msra.mxu0 0
    %189 = vmatprep.subr.bf16.mxu0 0
    %190 = vmatpush2.bf16.msra.mxu0 0
    %191 = vmatprep.subr.bf16.mxu0 0
    %192 = vmatpush2.bf16.msra.mxu0 0
    %193 = vmatprep.subr.bf16.mxu0 0
    %194 = vmatpush2.bf16.msra.mxu0 0
    %195 = vmatprep.subr.bf16.mxu0 0
    %196 = vmatpush2.bf16.msra.mxu0 0
    %197 = vmatprep.subr.bf16.mxu0 0
    %198 = vmatpush2.bf16.msra.mxu0 0
    %199 = vmatprep.subr.bf16.mxu0 0
    %200 = vmatpush2.bf16.msra.mxu0 0
    %201 = vmatprep.mubr.bf16.mxu0 0
    %202 = vmatmul.mubr.bf16.gmra.mxu0 %v105
    %v203 = vpop.f32.mrf.mxu0
    %v204 = vadd.f32 0.0, %v203
    %v205 = vpop.f32.mrf.mxu0
    %v206 = vpop.f32.mrf.mxu0
    %v207 = vadd.f32 0.0, %v206
    %v208 = vpop.f32.mrf.mxu0
    %209 = vmatprep.mubr.bf16.mxu0 0
    %210 = vmatmul.mubr.bf16.gmra.mxu0 %v106
    %v211 = vpop.f32.mrf.mxu0
    %v212 = vadd.f32 0.0, %v211
    %v213 = vpop.f32.mrf.mxu0
    %v214 = vpop.f32.mrf.mxu0
    %v215 = vadd.f32 0.0, %v214
    %v216 = vpop.f32.mrf.mxu0
    %217 = vmatprep.mubr.bf16.mxu0 0
    %218 = vmatmul.mubr.bf16.gmra.mxu0 %v107
    %v219 = vpop.f32.mrf.mxu0
    %v220 = vadd.f32 0.0, %v219
    %v221 = vpop.f32.mrf.mxu0
    %v222 = vpop.f32.mrf.mxu0
    %v223 = vadd.f32 0.0, %v222
    %v224 = vpop.f32.mrf.mxu0
    %225 = vmatprep.mubr.bf16.mxu0 0
    %226 = vmatmul.mubr.bf16.gmra.mxu0 %v108
    %v227 = vpop.f32.mrf.mxu0
    %v228 = vadd.f32 0.0, %v227
    %v229 = vpop.f32.mrf.mxu0
    %v230 = vpop.f32.mrf.mxu0
    %v231 = vadd.f32 0.0, %v230
    %v232 = vpop.f32.mrf.mxu0
    %233 = vmatprep.mubr.bf16.mxu0 0
    %234 = vmatmul.mubr.bf16.gmra.mxu0 %v109
    %v235 = vpop.f32.mrf.mxu0
    %v236 = vadd.f32 0.0, %v235
    %v237 = vpop.f32.mrf.mxu0
    %v238 = vpop.f32.mrf.mxu0
    %v239 = vadd.f32 0.0, %v238
    %v240 = vpop.f32.mrf.mxu0
    %241 = vmatprep.mubr.bf16.mxu0 0
    %242 = vmatmul.mubr.bf16.gmra.mxu0 %v110
    %v243 = vpop.f32.mrf.mxu0
    %v244 = vadd.f32 0.0, %v243
    %v245 = vpop.f32.mrf.mxu0
    %v246 = vpop.f32.mrf.mxu0
    %v247 = vadd.f32 0.0, %v246
    %v248 = vpop.f32.mrf.mxu0
    %249 = vmatprep.mubr.bf16.mxu0 0
    %250 = vmatmul.mubr.bf16.gmra.mxu0 %v111
    %v251 = vpop.f32.mrf.mxu0
    %v252 = vadd.f32 0.0, %v251
    %v253 = vpop.f32.mrf.mxu0
    %v254 = vpop.f32.mrf.mxu0
    %v255 = vadd.f32 0.0, %v254
    %v256 = vpop.f32.mrf.mxu0
    %257 = vmatprep.mubr.bf16.mxu0 0
    %258 = vmatmul.mubr.bf16.gmra.mxu0 %v112
    %v259 = vpop.f32.mrf.mxu0
    %v260 = vadd.f32 0.0, %v259
    %v261 = vpop.f32.mrf.mxu0
    %v262 = vpop.f32.mrf.mxu0
    %v263 = vadd.f32 0.0, %v262
    %v264 = vpop.f32.mrf.mxu0
    %265 = vdwg.mxu0
    %v266 = vpack.c.bf16 %v207, %v204
    %v267 = vpack.c.bf16 %v215, %v212
    %v268 = vpack.c.bf16 %v223, %v220
    %v269 = vpack.c.bf16 %v231, %v228
    %v270 = vpack.c.bf16 %v239, %v236
    %v271 = vpack.c.bf16 %v247, %v244
    %v272 = vpack.c.bf16 %v255, %v252
    %v273 = vpack.c.bf16 %v263, %v260
    %v282 = vunpack.c.l.b16 %v266
    %v283 = vunpack.c.h.b16 %v266
    %v284 = vunpack.c.l.b16 %v267
    %v285 = vunpack.c.h.b16 %v267
    %v286 = vunpack.c.l.b16 %v268
    %v287 = vunpack.c.h.b16 %v268
    %v288 = vunpack.c.l.b16 %v269
    %v289 = vunpack.c.h.b16 %v269
    %v290 = vunpack.c.l.b16 %v270
    %v291 = vunpack.c.h.b16 %v270
    %v292 = vunpack.c.l.b16 %v271
    %v293 = vunpack.c.h.b16 %v271
    %v294 = vunpack.c.l.b16 %v272
    %v295 = vunpack.c.h.b16 %v272
    %v296 = vunpack.c.l.b16 %v273
    %v297 = vunpack.c.h.b16 %v273
    %v298 = vpack.c.b16 %v282, %v282
    %v299 = vpack.c.b16 %v283, %v283
    %v300 = vpack.c.b16 %v284, %v284
    %v301 = vpack.c.b16 %v285, %v285
    %v302 = vpack.c.b16 %v286, %v286
    %v303 = vpack.c.b16 %v287, %v287
    %v304 = vpack.c.b16 %v288, %v288
    %v305 = vpack.c.b16 %v289, %v289
    %v306 = vpack.c.b16 %v290, %v290
    %v307 = vpack.c.b16 %v291, %v291
    %v308 = vpack.c.b16 %v292, %v292
    %v309 = vpack.c.b16 %v293, %v293
    %v310 = vpack.c.b16 %v294, %v294
    %v311 = vpack.c.b16 %v295, %v295
    %v312 = vpack.c.b16 %v296, %v296
    %v313 = vpack.c.b16 %v297, %v297
    %330 = vst [vmem:[#allocation7] sm:$0xf] %v298
    %331 = vst [vmem:[#allocation7 + $0x4] sm:$0xf] %v299
    %332 = vst [vmem:[#allocation7 + $0x8] sm:$0xf] %v300
    %333 = vst [vmem:[#allocation7 + $0xc] sm:$0xf] %v301
    %334 = vst [vmem:[#allocation7 + $0x10] sm:$0xf] %v302
    %335 = vst [vmem:[#allocation7 + $0x14] sm:$0xf] %v303
    %336 = vst [vmem:[#allocation7 + $0x18] sm:$0xf] %v304
    %337 = vst [vmem:[#allocation7 + $0x1c] sm:$0xf] %v305
    %338 = vst [vmem:[#allocation7 + $0x20] sm:$0xf] %v306
    %339 = vst [vmem:[#allocation7 + $0x24] sm:$0xf] %v307
    %340 = vst [vmem:[#allocation7 + $0x28] sm:$0xf] %v308
    %341 = vst [vmem:[#allocation7 + $0x2c] sm:$0xf] %v309
    %342 = vst [vmem:[#allocation7 + $0x30] sm:$0xf] %v310
    %343 = vst [vmem:[#allocation7 + $0x34] sm:$0xf] %v311
    %344 = vst [vmem:[#allocation7 + $0x38] sm:$0xf] %v312
    %345 = vst [vmem:[#allocation7 + $0x3c] sm:$0xf] %v313
    // Predicated region
    $region18: #{tpu_custom_call.1} parent=1 // pred_check
      _
    $region19: #{tpu_custom_call.1} parent=1 // pred_check_branch
      %347 = sbr.rel (0) target = $region21
    $region20: #{tpu_custom_call.1} parent=1 // pred_region
      %s349 = ssub.s32 1024, 1024
      %350 = vsyncadd [#allocation4], %s349
      %s351 = sshll.u32 [#allocation7], 4
      %s352 = int_to_ptr.vmem [resolvable:$true] %s351
      %357 = dma.vmem_to_hbm [thread:$0]  %s352, 1024, %s2, [#allocation4], 64, 64, 4
    $region21: #{tpu_custom_call.1} parent=1 // pred_fallthru
      _
    // Predicated region
    $region22: #{tpu_custom_call.1} parent=1 // pred_check
      _
    $region23: #{tpu_custom_call.1} parent=1 // pred_check_branch
      %359 = sbr.rel (0) target = $region25
    $region24: #{tpu_custom_call.1} parent=1 // pred_region
      %360 = dma.done [#allocation4], 1024
    $region25: #{tpu_custom_call.1} parent=1 // pred_fallthru
      _
    %361 = vsyncpa [#allocation3], 1
    %362 = vsyncpa [#allocation6], 1
    %363 = vsyncpa [#allocation4], 1

</llo_original>
